<compile_context>
chip_gen: v6e
topology: v6e:2x2x1
jax: 0.10.0
libtpu: 0.0.40
codegen_flags: <defaults>
</compile_context>

<pallas_src>
import jax
import jax.numpy as jnp
from jax.experimental import pallas as pl
from jax.experimental.pallas import tpu as pltpu

_HIGHEST = jax.lax.Precision.HIGHEST


def _round_up(a: int, b: int) -> int:
    return ((a + b - 1) // b) * b


def _fused_linear_kernel(w_ref, b_ref, x_ref, out_ref):
    """out = W_eff @ x_tile + b_eff, computed row-by-row on the VPU.

    w_ref  : SMEM (O2, K1) f32 -- fused weight, read as scalars
    b_ref  : SMEM (O2,)    f32 -- fused bias
    x_ref  : VMEM (K1, tm)     -- lane-dense column tile of x[b].T
    out_ref: VMEM (O2, tm)     -- matching tile of the permuted output
    """
    o2, k1 = w_ref.shape
    for o in range(o2):                       # O2 = 2 -> fully unrolled
        acc = x_ref[0:1, :] * w_ref[o, 0] + b_ref[o]
        for k in range(1, k1):                # K1 = 3 -> 2 more FMAs
            acc = acc + x_ref[k:k + 1, :] * w_ref[o, k]
        out_ref[o:o + 1, :] = acc


def model_forward(x, w1, b1, w2, b2, *, tile_n=131072, small_threshold=4096):
    """x: (B, M, K1) f32; w1: (O1, K1); b1: (O1,); w2: (O2, O1); b2: (O2,).
    Returns (B, O2, M) f32  (== v2.permute(0, 2, 1) of the fixed module)."""
    B, M, K1 = x.shape
    O1 = w1.shape[0]
    O2 = w2.shape[0]
    assert w1.shape == (O1, K1) and w2.shape == (O2, O1)

    # Algebraic fusion of the two linears (exact up to f32 rounding):
    #   v2 = x @ (W2 @ W1)^T + (W2 @ b1 + b2)
    w_eff = jnp.dot(w2, w1, precision=_HIGHEST)                       # (O2, K1)
    b_eff = jnp.dot(w2, b1.reshape(O1), precision=_HIGHEST) + b2.reshape(O2)

    N = B * M
    # Fast path: for tiny problems the pallas_call fixed cost, the wrapper
    # transpose and VMEM tiling dominate the handful of FLOPs; a single fused
    # XLA matmul + transpose is strictly faster.
    if N < small_threshold or M < 512:
        v = jnp.dot(x.reshape(N, K1), w_eff.T, precision=_HIGHEST) + b_eff
        return v.reshape(B, M, O2).transpose(0, 2, 1)                 # (B,O2,M)

    # One wrapper-side transpose to (B, K1, M): the kernel then reads
    # lane-dense column tiles and writes directly into the permuted output.
    # TODO(synk): if the producer can emit x already as (B, K1, M), this single
    # extra HBM pass over x disappears as well.
    xt = jnp.transpose(x, (0, 2, 1))                                  # (B,K1,M)

    # Column tile: large enough that per-step DMA (~20*tm bytes) dwarfs the
    # ~0.35 us per-step overhead, 128-aligned for unmasked lane-dense stores,
    # and at least 2 blocks per batch so both v7x TensorCores get grid steps.
    # The ragged last block (M % tm != 0) is masked by Pallas -- no jnp.pad.
    tm = min(max(int(tile_n) // 128, 1) * 128, _round_up(pl.cdiv(M, 2), 128))
    tm = max(tm, 128)
    grid = (B, pl.cdiv(M, tm))

    out = pl.pallas_call(
        _fused_linear_kernel,
        out_shape=jax.ShapeDtypeStruct((B, O2, M), jnp.float32),
        grid_spec=pl.GridSpec(
            grid=grid,
            in_specs=[
                pl.BlockSpec(memory_space=pltpu.MemorySpace.SMEM),    # W_eff
                pl.BlockSpec(memory_space=pltpu.MemorySpace.SMEM),    # b_eff
                pl.BlockSpec((pl.Squeezed(), K1, tm),
                             lambda b, i: (b, 0, i)),                 # x tile
            ],
            out_specs=pl.BlockSpec((pl.Squeezed(), O2, tm),
                                   lambda b, i: (b, 0, i)),
        ),
        compiler_params=pltpu.CompilerParams(
            dimension_semantics=("parallel", "parallel"),
            # (K1,tm)+(O2,tm) f32 blocks sublane-pad to 8 rows and are
            # double-buffered: ~128*tm bytes (~16 MB at tm=131072).  Raise the
            # scoped-VMEM limit above v5e's 16 MiB default while staying well
            # under v7x's 64 MiB physical VMEM.
            vmem_limit_bytes=48 * 1024 * 1024,
        ),
    )(w_eff, b_eff, xt)
    return out


def _reference(x, w1, b1, w2, b2):
    v1 = jnp.einsum("bmk,ok->bmo", x, w1, precision=_HIGHEST) + b1
    v2 = jnp.einsum("bmo,po->bmp", v1, w2, precision=_HIGHEST) + b2
    return jnp.transpose(v2, (0, 2, 1))


if __name__ == "__main__":
    key = jax.random.PRNGKey(0)
    kx, kx2, k1, k2, k3, k4 = jax.random.split(key, 6)

    # Parameters of the (fixed) module: Linear(3, 2) then Linear(2, 2).
    w1 = jax.random.uniform(k1, (2, 3), jnp.float32, -0.5, 0.5)
    b1 = jax.random.uniform(k2, (2,), jnp.float32, -0.5, 0.5)
    w2 = jax.random.uniform(k3, (2, 2), jnp.float32, -0.5, 0.5)
    b2 = jax.random.uniform(k4, (2,), jnp.float32, -0.5, 0.5)

    # 1) Literal module input (1, 3, 3): taken by the tiny-shape fast path.
    x_small = jax.random.normal(kx, (1, 3, 3), dtype=jnp.float32)
    out_small = jax.block_until_ready(model_forward(x_small, w1, b1, w2, b2))
    ref_small = _reference(x_small, w1, b1, w2, b2)
    assert out_small.shape == (1, 2, 3), out_small.shape
    assert jnp.allclose(out_small, ref_small, atol=1e-4, rtol=1e-4)

    # 2) Larger batched input that exercises the Pallas kernel path
    #    (grid (2, 2) with a ragged last column block, tm = 1152).
    x_big = jax.random.normal(kx2, (2, 2100, 3), dtype=jnp.float32)
    out_big = jax.block_until_ready(model_forward(x_big, w1, b1, w2, b2))
    ref_big = _reference(x_big, w1, b1, w2, b2)
    assert out_big.shape == (2, 2, 2100), out_big.shape
    assert jnp.allclose(out_big, ref_big, atol=1e-4, rtol=1e-4)

    print("KERNEL_OK")
</pallas_src>

<mosaic_0001>
module attributes {stable_mosaic.version = 11 : i64} {
  func.func @_fused_linear_kernel(%arg0: i32, %arg1: i32, %arg2: memref<2x3xf32, #tpu.memory_space<smem>>, %arg3: memref<2xf32, #tpu.memory_space<smem>>, %arg4: memref<1x3x1152xf32, #tpu.memory_space<vmem>>, %arg5: memref<1x2x1152xf32, #tpu.memory_space<vmem>>) attributes {dimension_semantics = [#tpu.dimension_semantics<parallel>, #tpu.dimension_semantics<parallel>], iteration_bounds = array<i64: 2, 2>, scalar_prefetch = 0 : i64, scratch_operands = 0 : i64, tpu.core_type = #tpu.core_type<tc>, window_params = [{transform_indices = @transform_0, window_bounds = array<i64: 2, 3>}, {transform_indices = @transform_1, window_bounds = array<i64: 2>}, {transform_indices = @transform_2, window_bounds = array<i64: 1, 3, 1152>}, {transform_indices = @transform_3, window_bounds = array<i64: 1, 2, 1152>}]} {
    %c0 = arith.constant 0 : index
    %c0_0 = arith.constant 0 : index
    %c0_1 = arith.constant 0 : index
    %0 = vector.load %arg4[%c0, %c0_0, %c0_1] : memref<1x3x1152xf32, #tpu.memory_space<vmem>>, vector<1x1x1152xf32>
    %1 = vector.shape_cast %0 : vector<1x1x1152xf32> to vector<1x1152xf32>
    %c0_2 = arith.constant 0 : index
    %c0_3 = arith.constant 0 : index
    %2 = memref.load %arg2[%c0_2, %c0_3] : memref<2x3xf32, #tpu.memory_space<smem>>
    %3 = vector.broadcast %2 : f32 to vector<1x1152xf32>
    %4 = arith.mulf %1, %3 : vector<1x1152xf32>
    %c0_4 = arith.constant 0 : index
    %5 = memref.load %arg3[%c0_4] : memref<2xf32, #tpu.memory_space<smem>>
    %6 = vector.broadcast %5 : f32 to vector<1x1152xf32>
    %7 = arith.addf %4, %6 : vector<1x1152xf32>
    %c0_5 = arith.constant 0 : index
    %c1 = arith.constant 1 : index
    %c0_6 = arith.constant 0 : index
    %8 = vector.load %arg4[%c0_5, %c1, %c0_6] : memref<1x3x1152xf32, #tpu.memory_space<vmem>>, vector<1x1x1152xf32>
    %9 = vector.shape_cast %8 : vector<1x1x1152xf32> to vector<1x1152xf32>
    %c0_7 = arith.constant 0 : index
    %c1_8 = arith.constant 1 : index
    %10 = memref.load %arg2[%c0_7, %c1_8] : memref<2x3xf32, #tpu.memory_space<smem>>
    %11 = vector.broadcast %10 : f32 to vector<1x1152xf32>
    %12 = arith.mulf %9, %11 : vector<1x1152xf32>
    %13 = arith.addf %7, %12 : vector<1x1152xf32>
    %c0_9 = arith.constant 0 : index
    %c2 = arith.constant 2 : index
    %c0_10 = arith.constant 0 : index
    %14 = vector.load %arg4[%c0_9, %c2, %c0_10] : memref<1x3x1152xf32, #tpu.memory_space<vmem>>, vector<1x1x1152xf32>
    %15 = vector.shape_cast %14 : vector<1x1x1152xf32> to vector<1x1152xf32>
    %c0_11 = arith.constant 0 : index
    %c2_12 = arith.constant 2 : index
    %16 = memref.load %arg2[%c0_11, %c2_12] : memref<2x3xf32, #tpu.memory_space<smem>>
    %17 = vector.broadcast %16 : f32 to vector<1x1152xf32>
    %18 = arith.mulf %15, %17 : vector<1x1152xf32>
    %19 = arith.addf %13, %18 : vector<1x1152xf32>
    %c0_13 = arith.constant 0 : index
    %c0_14 = arith.constant 0 : index
    %c0_15 = arith.constant 0 : index
    %20 = vector.load %arg5[%c0_13, %c0_14, %c0_15] : memref<1x2x1152xf32, #tpu.memory_space<vmem>>, vector<1x1x1152xf32>
    %21 = vector.shape_cast %20 : vector<1x1x1152xf32> to vector<1x1152xf32>
    %22 = vector.shape_cast %19 : vector<1x1152xf32> to vector<1x1x1152xf32>
    tpu.vector_store %arg5[%c0_13, %c0_14, %c0_15], %22 {strides = array<i32>} : memref<1x2x1152xf32, #tpu.memory_space<vmem>>, vector<1x1x1152xf32>,
    %c0_16 = arith.constant 0 : index
    %c0_17 = arith.constant 0 : index
    %c0_18 = arith.constant 0 : index
    %23 = vector.load %arg4[%c0_16, %c0_17, %c0_18] : memref<1x3x1152xf32, #tpu.memory_space<vmem>>, vector<1x1x1152xf32>
    %24 = vector.shape_cast %23 : vector<1x1x1152xf32> to vector<1x1152xf32>
    %c1_19 = arith.constant 1 : index
    %c0_20 = arith.constant 0 : index
    %25 = memref.load %arg2[%c1_19, %c0_20] : memref<2x3xf32, #tpu.memory_space<smem>>
    %26 = vector.broadcast %25 : f32 to vector<1x1152xf32>
    %27 = arith.mulf %24, %26 : vector<1x1152xf32>
    %c1_21 = arith.constant 1 : index
    %28 = memref.load %arg3[%c1_21] : memref<2xf32, #tpu.memory_space<smem>>
    %29 = vector.broadcast %28 : f32 to vector<1x1152xf32>
    %30 = arith.addf %27, %29 : vector<1x1152xf32>
    %c0_22 = arith.constant 0 : index
    %c1_23 = arith.constant 1 : index
    %c0_24 = arith.constant 0 : index
    %31 = vector.load %arg4[%c0_22, %c1_23, %c0_24] : memref<1x3x1152xf32, #tpu.memory_space<vmem>>, vector<1x1x1152xf32>
    %32 = vector.shape_cast %31 : vector<1x1x1152xf32> to vector<1x1152xf32>
    %c1_25 = arith.constant 1 : index
    %c1_26 = arith.constant 1 : index
    %33 = memref.load %arg2[%c1_25, %c1_26] : memref<2x3xf32, #tpu.memory_space<smem>>
    %34 = vector.broadcast %33 : f32 to vector<1x1152xf32>
    %35 = arith.mulf %32, %34 : vector<1x1152xf32>
    %36 = arith.addf %30, %35 : vector<1x1152xf32>
    %c0_27 = arith.constant 0 : index
    %c2_28 = arith.constant 2 : index
    %c0_29 = arith.constant 0 : index
    %37 = vector.load %arg4[%c0_27, %c2_28, %c0_29] : memref<1x3x1152xf32, #tpu.memory_space<vmem>>, vector<1x1x1152xf32>
    %38 = vector.shape_cast %37 : vector<1x1x1152xf32> to vector<1x1152xf32>
    %c1_30 = arith.constant 1 : index
    %c2_31 = arith.constant 2 : index
    %39 = memref.load %arg2[%c1_30, %c2_31] : memref<2x3xf32, #tpu.memory_space<smem>>
    %40 = vector.broadcast %39 : f32 to vector<1x1152xf32>
    %41 = arith.mulf %38, %40 : vector<1x1152xf32>
    %42 = arith.addf %36, %41 : vector<1x1152xf32>
    %c0_32 = arith.constant 0 : index
    %c1_33 = arith.constant 1 : index
    %c0_34 = arith.constant 0 : index
    %43 = vector.load %arg5[%c0_32, %c1_33, %c0_34] : memref<1x2x1152xf32, #tpu.memory_space<vmem>>, vector<1x1x1152xf32>
    %44 = vector.shape_cast %43 : vector<1x1x1152xf32> to vector<1x1152xf32>
    %45 = vector.shape_cast %42 : vector<1x1152xf32> to vector<1x1x1152xf32>
    tpu.vector_store %arg5[%c0_32, %c1_33, %c0_34], %45 {strides = array<i32>} : memref<1x2x1152xf32, #tpu.memory_space<vmem>>, vector<1x1x1152xf32>,
    return
  }
  func.func @transform_0(%arg0: i32, %arg1: i32) -> (i32, i32) {
    %c0_i32 = arith.constant 0 : i32
    %c0_i32_0 = arith.constant 0 : i32
    %c0_i32_1 = arith.constant 0 : i32
    return %c0_i32, %c0_i32_0 : i32, i32
  }
  func.func @transform_1(%arg0: i32, %arg1: i32) -> i32 {
    %c0_i32 = arith.constant 0 : i32
    %c0_i32_0 = arith.constant 0 : i32
    return %c0_i32 : i32
  }
  func.func @transform_2(%arg0: i32, %arg1: i32) -> (i32, i32, i32) {
    %c0_i32 = arith.constant 0 : i32
    %c0_i32_0 = arith.constant 0 : i32
    return %arg0, %c0_i32, %arg1 : i32, i32, i32
  }
  func.func @transform_3(%arg0: i32, %arg1: i32) -> (i32, i32, i32) {
    %c0_i32 = arith.constant 0 : i32
    %c0_i32_0 = arith.constant 0 : i32
    return %arg0, %c0_i32, %arg1 : i32, i32, i32
  }
}

</mosaic_0001>

<llo_original>
// kernel: tpu_custom_call.1
$region0: #{tpu_custom_call.1}
  #allocation0 [shape = 'u32[]', space=smem, size = 0x4, offset = 0x4, fixed_abs, tag = 'smem constant byte address 0x4 - core index']
  #allocation1 [shape = 'u32[144,128]{1,0:T(1,128)}', space=vmem, size = 0x12000, scoped, tag = 'internal scratch']
  %s0 = inlined_call_operand.vmem [shape: f32[2,3], index: 0, kind: input, shape index: {}]
  %s1 = inlined_call_operand.vmem [shape: f32[2], index: 1, kind: input, shape index: {}]
  %s2 = inlined_call_operand.vmem [shape: f32[2,3,2100], index: 2, kind: input, shape index: {}]
  %s3 = inlined_call_operand.hbm [shape: f32[2,2,2100], index: 3, kind: output, shape index: {}]
  %s4 = sld [smem:[#allocation0]]
  $region53: #{tpu_custom_call.1} parent=0
    _
  %s6 = ssub.s32 1, %s4
  %s7 = scalar_select 0, %s6, %s4
  $region1: #{tpu_custom_call.1} parent=0
    #allocation2 [shape = 'u8[1024]{0}', space=smem, size = 0x400, scoped, tag = 'input window, operand 0, single buffered']
    #allocation3 [shape = 's32[2]{0}', space=sflag, size = 0x8, scoped, tag = 'scoped memory for tpu_custom_call.1']
    #allocation4 [shape = 's32[2]{0}', space=sflag, size = 0x8, scoped, tag = 'scoped memory for tpu_custom_call.1']
    #allocation5 [shape = 'u8[512]{0}', space=smem, size = 0x200, scoped, tag = 'input window, operand 1, single buffered']
    #allocation6 [shape = 's32[1]{0}', space=sflag, size = 0x4, scoped, tag = 'scoped memory for tpu_custom_call.1']
    #allocation7 [shape = 'u8[18432]{0}', space=vmem, size = 0x4800, scoped, tag = 'output window, operand 0']
    %8 = vsyncpa [#allocation4], 0
    %9 = vsyncpa [#allocation6], 0
    %10 = vsyncpa [#allocation3], 0
    %s11 = scalar_lea.sflag [#allocation3], 1
    %12 = vsyncpa %s11, 0
    loop: start=0, step=1, limit=6
    $region2: #{tpu_custom_call.1} parent=1 // loop_pre_header
      _
    $region3: #{tpu_custom_call.1} parent=1 // loop_header
      %s14 = sphi 0, %s18
      %p15 = scmp.ge.s32.totalorder %s14, 6
      %s21 = sphi 0, %s33
      %s22 = sphi 0, %s29
      %s23 = sphi 0, %s21
      %s24 = sphi 0, %s22
      %s25 = sphi 0, %s23
      %s26 = sphi 0, %s24
      %s34 = sphi 0, %s34
      %s36 = sphi 0, %s34
      %s37 = sphi 0, %s36
      %s51 = sphi 0, %s37
      %s55 = sphi 0, %s55
      %s57 = sphi 0, %s55
      %s58 = sphi 0, %s57
      %s72 = sphi 0, %s58
      %s80 = sphi 0, %s82
      %s83 = sphi 0, %s80
      %s84 = sphi 0, %s83
      %s100 = sphi 0, %s84
      %s108 = sphi 0, %s110
      %s111 = sphi 0, %s108
      %s112 = sphi 0, %s111
      %s128 = sphi 0, %s112
    $region4: #{tpu_custom_call.1} parent=1 // loop_header_branch
      %17 = sbr.rel (%p15) target = $region8
    $region5: #{tpu_custom_call.1} parent=1 // loop_body
      %s19 = ssub.s32 %s14, 1
      %s20 = ssub.s32 %s14, 2
      %s27 = sadd.s32 1, %s22
      %p28 = scmp.ge.s32.totalorder %s27, 2
      %s29 = scalar_select %p28, 0, %s27
      %s30 = sadd.s32 1, %s21
      %s31 = scalar_select %p28, %s30, %s21
      %p32 = scmp.ge.s32.totalorder %s31, 2
      %s33 = scalar_select %p32, 0, %s31
      %s35 = sadd.s32 %s34, 1
      %p38 = scmp.eq.s32.totalorder %s14, 3
      %p39 = scmp.ne.s32.totalorder %s34, %s36
      %p40 = scmp.eq.s32.totalorder %s14, 0
      %p41 = por %p39, %p40
      %p42 = scmp.ne.s32.totalorder %s34, %s36
      %p43 = scmp.eq.s32.totalorder %s19, 3
      %p44 = por %p42, %p43
      %p45 = scmp.ne.s32.totalorder %s36, %s37
      %p46 = scmp.eq.s32.totalorder %s19, 0
      %p47 = por %p45, %p46
      %p48 = scmp.ne.s32.totalorder %s36, %s37
      %p49 = scmp.eq.s32.totalorder %s20, 3
      %p50 = por %p48, %p49
      %p52 = scmp.ne.s32.totalorder %s37, %s51
      %p53 = scmp.eq.s32.totalorder %s20, 0
      %p54 = por %p52, %p53
      %s56 = sadd.s32 %s55, 1
      %p59 = scmp.eq.s32.totalorder %s14, 3
      %p60 = scmp.ne.s32.totalorder %s55, %s57
      %p61 = scmp.eq.s32.totalorder %s14, 0
      %p62 = por %p60, %p61
      %p63 = scmp.ne.s32.totalorder %s55, %s57
      %p64 = scmp.eq.s32.totalorder %s19, 3
      %p65 = por %p63, %p64
      %p66 = scmp.ne.s32.totalorder %s57, %s58
      %p67 = scmp.eq.s32.totalorder %s19, 0
      %p68 = por %p66, %p67
      %p69 = scmp.ne.s32.totalorder %s57, %s58
      %p70 = scmp.eq.s32.totalorder %s20, 3
      %p71 = por %p69, %p70
      %p73 = scmp.ne.s32.totalorder %s58, %s72
      %p74 = scmp.eq.s32.totalorder %s20, 0
      %p75 = por %p73, %p74
      %s76 = ssub.s32 %s21, %s33
      %s77 = ssub.s32 %s22, %s29
      %s78 = sor.u32 %s76, %s77
      %p79 = scmp.eq.s32.totalorder %s78, 0
      %s81 = sadd.s32 %s80, 1
      %s82 = scalar_select %p79, %s80, %s81
      %p85 = pneg %p79
      %p86 = scmp.eq.s32.totalorder %s14, 3
      %p87 = por %p85, %p86
      %p88 = scmp.ne.s32.totalorder %s80, %s83
      %p89 = scmp.eq.s32.totalorder %s14, 0
      %p90 = por %p88, %p89
      %p91 = scmp.ne.s32.totalorder %s80, %s83
      %p92 = scmp.eq.s32.totalorder %s19, 3
      %p93 = por %p91, %p92
      %p94 = scmp.ne.s32.totalorder %s83, %s84
      %p95 = scmp.eq.s32.totalorder %s19, 0
      %p96 = por %p94, %p95
      %p97 = scmp.ne.s32.totalorder %s83, %s84
      %p98 = scmp.eq.s32.totalorder %s20, 3
      %p99 = por %p97, %p98
      %p101 = scmp.ne.s32.totalorder %s84, %s100
      %p102 = scmp.eq.s32.totalorder %s20, 0
      %p103 = por %p101, %p102
      %s104 = ssub.s32 %s21, %s33
      %s105 = ssub.s32 %s22, %s29
      %s106 = sor.u32 %s104, %s105
      %p107 = scmp.eq.s32.totalorder %s106, 0
      %s109 = sadd.s32 %s108, 1
      %s110 = scalar_select %p107, %s108, %s109
      %p113 = pneg %p107
      %p114 = scmp.eq.s32.totalorder %s14, 3
      %p115 = por %p113, %p114
      %p116 = scmp.ne.s32.totalorder %s108, %s111
      %p117 = scmp.eq.s32.totalorder %s14, 0
      %p118 = por %p116, %p117
      %p119 = scmp.ne.s32.totalorder %s108, %s111
      %p120 = scmp.eq.s32.totalorder %s19, 3
      %p121 = por %p119, %p120
      %p122 = scmp.ne.s32.totalorder %s111, %s112
      %p123 = scmp.eq.s32.totalorder %s19, 0
      %p124 = por %p122, %p123
      %p125 = scmp.ne.s32.totalorder %s111, %s112
      %p126 = scmp.eq.s32.totalorder %s20, 3
      %p127 = por %p125, %p126
      %p129 = scmp.ne.s32.totalorder %s112, %s128
      %p130 = scmp.eq.s32.totalorder %s20, 0
      %p131 = por %p129, %p130
      %p132 = scmp.le.s32.totalorder 1, %s14
      %p133 = scmp.lt.s32.totalorder %s14, 5
      %p134 = pnand %p132, %p133
      %p135 = pneg %p134
      // Predicated region
      $region9: #{tpu_custom_call.1} parent=5 // pred_check
        _
      $region10: #{tpu_custom_call.1} parent=5 // pred_check_branch
        %137 = sbr.rel (%p134) target = $region12
      $region11: #{tpu_custom_call.1} parent=5 // pred_region
        %s138 = ssub.s32 %s14, 1
        // Predicated region
        $region13: #{tpu_custom_call.1} parent=11 // pred_check
          %p139 = pneg %p47
        $region14: #{tpu_custom_call.1} parent=11 // pred_check_branch
          %141 = sbr.rel (%p139) target = $region16
        $region15: #{tpu_custom_call.1} parent=11 // pred_region
          %s143 = ssub.s32 32, 32
          %144 = vsyncadd [#allocation4], %s143
          %s146 = sshll.u32 %s0, 4
          %s147 = int_to_ptr.vmem [resolvable:$true] %s146
          %149 = dma.vmem_to_smem %s147, 32, [#allocation2], [#allocation4]
        $region16: #{tpu_custom_call.1} parent=11 // pred_fallthru
          _
        // Predicated region
        $region17: #{tpu_custom_call.1} parent=11 // pred_check
          %p150 = pneg %p68
        $region18: #{tpu_custom_call.1} parent=11 // pred_check_branch
          %152 = sbr.rel (%p150) target = $region20
        $region19: #{tpu_custom_call.1} parent=11 // pred_region
          %s154 = ssub.s32 16, 16
          %155 = vsyncadd [#allocation6], %s154
          %s157 = sshll.u32 %s1, 4
          %s158 = int_to_ptr.vmem [resolvable:$true] %s157
          %160 = dma.vmem_to_smem %s158, 16, [#allocation5], [#allocation6]
        $region20: #{tpu_custom_call.1} parent=11 // pred_fallthru
          _
      $region12: #{tpu_custom_call.1} parent=5 // pred_fallthru
        _
      %p161 = scmp.lt.s32.totalorder %s14, 4
      // Predicated region
      $region21: #{tpu_custom_call.1} parent=5 // pred_check
        %p162 = pneg %p161
      $region22: #{tpu_custom_call.1} parent=5 // pred_check_branch
        %164 = sbr.rel (%p162) target = $region24
      $region23: #{tpu_custom_call.1} parent=5 // pred_region
        // Predicated region
        $region25: #{tpu_custom_call.1} parent=23 // pred_check
          %p165 = pneg %p90
        $region26: #{tpu_custom_call.1} parent=23 // pred_check_branch
          %167 = sbr.rel (%p165) target = $region28
        $region27: #{tpu_custom_call.1} parent=23 // pred_region
          %s168 = smul.u32 9, %s22
          %s169 = ssub.s32 17, %s168
          %p170 = scmp.lt.s32.totalorder %s169, 9
          %s171 = scalar_select %p170, %s169, 9
          %s172 = smul.u32 64, %s171
          %p173 = scmp.lt.s32.totalorder %s21, 1
          %s174 = scalar_select %p173, %s21, 1
          %p175 = scmp.lt.s32.totalorder %s168, 16
          %s176 = scalar_select %p175, %s168, 16
          %s177 = smul.addr %s174, 17
          %s178 = sadd.s32 %s176, %s177
          %s179 = smul.addr %s178, 4
          %s180 = scalar_lea.vmem %s2, %s179
          %s181 = smul.u32 9, %s22
          %s182 = ssub.s32 17, %s181
          %p183 = scmp.lt.s32.totalorder %s182, 9
          %s184 = scalar_select %p183, %s182, 9
          %s185 = smul.u32 64, %s184
        $region28: #{tpu_custom_call.1} parent=23 // pred_fallthru
          _
      $region24: #{tpu_custom_call.1} parent=5 // pred_fallthru
        _
      %p186 = scmp.le.s32.totalorder 1, %s14
      %p187 = scmp.lt.s32.totalorder %s14, 5
      %p188 = pnand %p186, %p187
      %p189 = pneg %p188
      // Predicated region
      $region29: #{tpu_custom_call.1} parent=5 // pred_check
        _
      $region30: #{tpu_custom_call.1} parent=5 // pred_check_branch
        %191 = sbr.rel (%p188) target = $region32
      $region31: #{tpu_custom_call.1} parent=5 // pred_region
        %s192 = ssub.s32 %s14, 1
        // Predicated region
        $region33: #{tpu_custom_call.1} parent=31 // pred_check
          %p193 = pneg %p47
        $region34: #{tpu_custom_call.1} parent=31 // pred_check_branch
          %195 = sbr.rel (%p193) target = $region36
        $region35: #{tpu_custom_call.1} parent=31 // pred_region
          %196 = dma.done [#allocation4], 32
        $region36: #{tpu_custom_call.1} parent=31 // pred_fallthru
          _
        // Predicated region
        $region37: #{tpu_custom_call.1} parent=31 // pred_check
          %p197 = pneg %p68
        $region38: #{tpu_custom_call.1} parent=31 // pred_check_branch
          %199 = sbr.rel (%p197) target = $region40
        $region39: #{tpu_custom_call.1} parent=31 // pred_region
          %200 = dma.done [#allocation6], 16
        $region40: #{tpu_custom_call.1} parent=31 // pred_fallthru
          _
        %201 = sfence
        %p202 = pneg %p47
        %p203 = pneg %p44
        %p204 = pneg %p68
        %p205 = pneg %p65
        %s206 = smul.u32 9, %s24
        %s207 = ssub.s32 17, %s206
        %p208 = scmp.lt.s32.totalorder %s207, 9
        %s209 = scalar_select %p208, %s207, 9
        %s210 = smul.u32 64, %s209
        %p211 = scmp.lt.s32.totalorder %s23, 1
        %s212 = scalar_select %p211, %s23, 1
        %p213 = scmp.lt.s32.totalorder %s206, 16
        %s214 = scalar_select %p213, %s206, 16
        %s215 = smul.addr %s212, 17
        %s216 = sadd.s32 %s214, %s215
        %s217 = smul.addr %s216, 4
        %s218 = scalar_lea.vmem %s2, %s217
        %p219 = pneg %p96
        %p220 = pneg %p93
        %p221 = pneg %p124
        %p222 = pneg %p121
        %s223 = sand.u32 %s111, 1
        %s224 = scalar_lea.sflag [#allocation3], %s223
        %s225 = sand.u32 %s111, 1
        %s226 = smul.addr %s225, 18
        %s227 = scalar_lea.vmem [#allocation7], %s226
        %s228 = smul.u32 9, %s24
        %s229 = ssub.s32 17, %s228
        %p230 = scmp.lt.s32.totalorder %s229, 9
        %s231 = scalar_select %p230, %s229, 9
        %s232 = smul.u32 64, %s231
        %p233 = scmp.lt.s32.totalorder %s23, 1
        %s234 = scalar_select %p233, %s23, 1
        %p235 = scmp.lt.s32.totalorder %s228, 16
        %s236 = scalar_select %p235, %s228, 16
        %s237 = smul.addr %s234, 17
        %s238 = sadd.s32 %s236, %s237
        %s239 = smul.addr %s238, 4
        %s240 = scalar_lea.vmem %s2, %s239
        %s241 = smul.u32 9, %s24
        %s242 = ssub.s32 17, %s241
        %p243 = scmp.lt.s32.totalorder %s242, 9
        %s244 = scalar_select %p243, %s242, 9
        %s245 = smul.u32 64, %s244
        %s246 = smul.u32 9, %s24
        %s247 = ssub.s32 17, %s246
        %p248 = scmp.lt.s32.totalorder %s247, 9
        %s249 = scalar_select %p248, %s247, 9
        %s250 = smul.u32 32, %s249
        %v251 = vld [vmem:[%s240] ss:$4 sm:$0xff]
        %s252 = scalar_lea.vmem %s240, 32
        %v253 = vld [vmem:[%s252] ss:$4 sm:$0x1]
        %s254 = sld [smem:[#allocation2]]
        %v255 = vstv %s254
        %v256 = vmul.f32 %v251, %v255
        %v257 = vmul.f32 %v253, %v255
        %s258 = sld [smem:[#allocation5]]
        %v259 = vstv %s258
        %v260 = vadd.f32 %v256, %v259
        %v261 = vadd.f32 %v257, %v259
        %s262 = scalar_lea.vmem %s240, 1
        %v263 = vld [vmem:[%s262] ss:$4 sm:$0xff]
        %s264 = scalar_lea.vmem %s240, 33
        %v265 = vld [vmem:[%s264] ss:$4 sm:$0x1]
        %s266 = sld [smem:[#allocation2 + $0x1]]
        %v267 = vstv %s266
        %v268 = vmul.f32 %v263, %v267
        %v269 = vmul.f32 %v265, %v267
        %v270 = vadd.f32 %v260, %v268
        %v271 = vadd.f32 %v261, %v269
        %s272 = scalar_lea.vmem %s240, 2
        %v273 = vld [vmem:[%s272] ss:$4 sm:$0xff]
        %s274 = scalar_lea.vmem %s240, 34
        %v275 = vld [vmem:[%s274] ss:$4 sm:$0x1]
        %s276 = sld [smem:[#allocation2 + $0x2]]
        %v277 = vstv %s276
        %v278 = vmul.f32 %v273, %v277
        %v279 = vmul.f32 %v275, %v277
        %v280 = vadd.f32 %v270, %v278
        %v281 = vadd.f32 %v271, %v279
        %282 = vst [vmem:[%s227] ss:$2 sm:$0xff] %v280
        %v283 = vlaneseq
        %vm284 = vcmp.ge.s32.totalorder %v283, 0
        %vm285 = vcmp.lt.s32.totalorder %v283, 128
        %vm286 = vmand %vm284, %vm285
        %s287 = scalar_lea.vmem %s227, 16 [#allocation7]
        %288 = vst.msk [vmem:[%s287] ss:$2 sm:$0x1] %vm286, %v281
        %v289 = vld [vmem:[%s240] ss:$4 sm:$0xff]
        %v290 = vld [vmem:[%s252] ss:$4 sm:$0x1]
        %s291 = sld [smem:[#allocation2 + $0x80]]
        %v292 = vstv %s291
        %v293 = vmul.f32 %v289, %v292
        %v294 = vmul.f32 %v290, %v292
        %s295 = sld [smem:[#allocation5 + $0x1]]
        %v296 = vstv %s295
        %v297 = vadd.f32 %v293, %v296
        %v298 = vadd.f32 %v294, %v296
        %v299 = vld [vmem:[%s262] ss:$4 sm:$0xff]
        %v300 = vld [vmem:[%s264] ss:$4 sm:$0x1]
        %s301 = sld [smem:[#allocation2 + $0x81]]
        %v302 = vstv %s301
        %v303 = vmul.f32 %v299, %v302
        %v304 = vmul.f32 %v300, %v302
        %v305 = vadd.f32 %v297, %v303
        %v306 = vadd.f32 %v298, %v304
        %v307 = vld [vmem:[%s272] ss:$4 sm:$0xff]
        %v308 = vld [vmem:[%s274] ss:$4 sm:$0x1]
        %s309 = sld [smem:[#allocation2 + $0x82]]
        %v310 = vstv %s309
        %v311 = vmul.f32 %v307, %v310
        %v312 = vmul.f32 %v308, %v310
        %v313 = vadd.f32 %v305, %v311
        %v314 = vadd.f32 %v306, %v312
        %s315 = scalar_lea.vmem %s227, 1 [#allocation7]
        %316 = vst [vmem:[%s315] ss:$2 sm:$0xff] %v313
        %s317 = scalar_lea.vmem %s227, 17 [#allocation7]
        %318 = vst.msk [vmem:[%s317] ss:$2 sm:$0x1] %vm286, %v314
        %s319 = sand.u32 %s111, 1
        %s320 = scalar_lea.sflag [#allocation3], %s319
        %s321 = sand.u32 %s111, 1
        %s322 = smul.addr %s321, 18
        %s323 = scalar_lea.vmem [#allocation7], %s322
        // Predicated region
        $region41: #{tpu_custom_call.1} parent=31 // pred_check
          %p324 = pneg %p121
        $region42: #{tpu_custom_call.1} parent=31 // pred_check_branch
          %326 = sbr.rel (%p324) target = $region44
        $region43: #{tpu_custom_call.1} parent=31 // pred_region
          %s327 = smul.u32 9, %s24
          %s328 = ssub.s32 17, %s327
          %p329 = scmp.lt.s32.totalorder %s328, 9
          %s330 = scalar_select %p329, %s328, 9
          %s331 = smul.u32 32, %s330
          %s333 = ssub.s32 288, %s331
          %334 = vsyncadd %s320, %s333
          %p335 = scmp.ne.s32.totalorder 0, %s331
          %s336 = smul.addr %s23, 17
          %s337 = sadd.s32 %s327, %s336
          %s338 = smul.addr %s337, 32
          %s339 = scalar_lea.hbm %s3, %s338
          %s340 = smul.u32 %s330, 2
          %s341 = sshll.u32 %s340, 4
          %s342 = sshll.u32 %s323, 4
          %s343 = int_to_ptr.vmem [resolvable:$true] %s342
          %345 = dma.vmem_to_hbm [thread:$0]  (%p335), %s343, %s341, %s339, %s320
        $region44: #{tpu_custom_call.1} parent=31 // pred_fallthru
          _
      $region32: #{tpu_custom_call.1} parent=5 // pred_fallthru
        _
      %p346 = scmp.le.s32.totalorder 2, %s14
      // Predicated region
      $region45: #{tpu_custom_call.1} parent=5 // pred_check
        %p347 = pneg %p346
      $region46: #{tpu_custom_call.1} parent=5 // pred_check_branch
        %349 = sbr.rel (%p347) target = $region48
      $region47: #{tpu_custom_call.1} parent=5 // pred_region
        %s350 = ssub.s32 %s14, 2
        // Predicated region
        $region49: #{tpu_custom_call.1} parent=47 // pred_check
          %p351 = pneg %p127
        $region50: #{tpu_custom_call.1} parent=47 // pred_check_branch
          %353 = sbr.rel (%p351) target = $region52
        $region51: #{tpu_custom_call.1} parent=47 // pred_region
          %s354 = sand.u32 %s112, 1
          %s355 = scalar_lea.sflag [#allocation3], %s354
          %s356 = sand.u32 %s112, 1
          %s357 = smul.addr %s356, 18
          %s358 = scalar_lea.vmem [#allocation7], %s357
          %359 = dma.done %s355, 288
        $region52: #{tpu_custom_call.1} parent=47 // pred_fallthru
          _
      $region48: #{tpu_custom_call.1} parent=5 // pred_fallthru
        _
    $region6: #{tpu_custom_call.1} parent=1 // loop_footer
      %s18 = sadd.s32 1, %s14
    $region7: #{tpu_custom_call.1} parent=1 // loop_footer_branch
      %13 = sbr.rel target = $region3
    $region8: #{tpu_custom_call.1} parent=1 // loop_exit
      _
    %360 = vsyncpa [#allocation3], 1
    %s361 = scalar_lea.sflag [#allocation3], 1
    %362 = vsyncpa %s361, 1
    %363 = vsyncpa [#allocation4], 1
    %s364 = scalar_lea.sflag [#allocation4], 1
    %365 = vsyncpa %s364, 1
    %366 = vsyncpa [#allocation6], 1

</llo_original>
